<compile_context>
chip_gen: v7x
topology: tpu7x:2x2x1
jax: 0.10.0
libtpu: 0.0.40
codegen_flags: <defaults>
</compile_context>

<pallas_src>
import functools

import jax
import jax.numpy as jnp
from jax.experimental import pallas as pl
from jax.experimental.pallas import tpu as pltpu


# ----------------------------------------------------------------- kernels ---
def _conv_gemm_stats_kernel(p_ref, w_ref, b_ref, y_ref, stats_ref):
    # p_ref:     (1, K, TS)        bf16 im2col patches (transposed layout)
    # w_ref:     (C_out_p, K)      bf16 conv weight
    # b_ref:     (C_out_p, 1)      f32 conv bias
    # y_ref:     (1, C_out_p, TS)  f32 conv output (pre-BN)
    # stats_ref: (1, 1, C_out_p, 2) f32 per-tile [sum, sumsq] partials
    y = jnp.dot(w_ref[...], p_ref[0], preferred_element_type=jnp.float32)
    y = y + b_ref[...]                       # broadcast over lanes
    y_ref[0] = y
    ssum = jnp.sum(y, axis=1, keepdims=True)         # (C_out_p, 1)
    ssq = jnp.sum(y * y, axis=1, keepdims=True)      # (C_out_p, 1)
    stats_ref[0, 0] = jnp.concatenate([ssum, ssq], axis=1)


def _bn_relu_kernel(y_ref, scale_ref, shift_ref, o_ref):
    # y_ref: (1, C_out_p, TS) f32; scale/shift: (C_out_p, 1) f32
    o_ref[0] = jnp.maximum(y_ref[0] * scale_ref[...] + shift_ref[...], 0.0)


# --------------------------------------------------------------- utilities ---
def _round_up(x, m):
    return (x + m - 1) // m * m


def _pick_spatial_tile(S):
    # Prefer lane-dense tiles (multiples of 128) that divide S exactly;
    # otherwise use the full spatial extent as one block (valid per the
    # "divisible by 128 or equal to full dim" rule).
    for ts in (1024, 512, 256, 128):
        if S % ts == 0:
            return ts
    return S


# ----------------------------------------------------------------- wrapper ---
@functools.partial(jax.jit, static_argnames=("kernel_size", "stride", "padding"))
def conv_block(x, weight, bias, gamma, beta, *, kernel_size=4, stride=2, padding=1):
    """ConvBlock forward. x: (N, C_in, H, W) NCHW -> (N, C_out, OH, OW) NCHW."""
    N, C_in, H, W = x.shape
    C_out = weight.shape[0]
    KH = KW = kernel_size
    OH = (H + 2 * padding - KH) // stride + 1
    OW = (W + 2 * padding - KW) // stride + 1
    S = OH * OW
    K = C_in * KH * KW
    C_out_p = _round_up(C_out, 8)            # sublane alignment

    # im2col (XLA identity grouped conv), bf16, output (N, K, OH, OW) with the
    # feature dim ordered (c_in, kh, kw) -> matches weight.reshape(C_out, K).
    patches = jax.lax.conv_general_dilated_patches(
        x.astype(jnp.bfloat16), (KH, KW), (stride, stride),
        [(padding, padding), (padding, padding)])
    p_t = patches.reshape(N, K, S)           # sublanes = K, lanes = spatial

    w_mat = weight.reshape(C_out, K)
    if C_out_p != C_out:
        w_mat = jnp.pad(w_mat, ((0, C_out_p - C_out), (0, 0)))
        bias_p = jnp.pad(bias, (0, C_out_p - C_out))
        gamma_p = jnp.pad(gamma, (0, C_out_p - C_out))
        beta_p = jnp.pad(beta, (0, C_out_p - C_out))
    else:
        bias_p, gamma_p, beta_p = bias, gamma, beta
    w_bf = w_mat.astype(jnp.bfloat16)
    b_col = bias_p.reshape(C_out_p, 1).astype(jnp.float32)

    TS = _pick_spatial_tile(S)
    num_s = S // TS
    grid = (N, num_s)

    # ---- pass 1: conv GEMM + bias, with per-tile BN stat partials ----------
    y, stats = pl.pallas_call(
        _conv_gemm_stats_kernel,
        grid=grid,
        in_specs=[
            pl.BlockSpec((1, K, TS), lambda n, s: (n, 0, s)),
            pl.BlockSpec((C_out_p, K), lambda n, s: (0, 0)),
            pl.BlockSpec((C_out_p, 1), lambda n, s: (0, 0)),
        ],
        out_specs=[
            pl.BlockSpec((1, C_out_p, TS), lambda n, s: (n, 0, s)),
            pl.BlockSpec((1, 1, C_out_p, 2), lambda n, s: (n, s, 0, 0)),
        ],
        out_shape=[
            jax.ShapeDtypeStruct((N, C_out_p, S), jnp.float32),
            jax.ShapeDtypeStruct((N, num_s, C_out_p, 2), jnp.float32),
        ],
        compiler_params=pltpu.CompilerParams(
            dimension_semantics=("parallel", "parallel")),
    )(p_t, w_bf, b_col)

    # ---- global BatchNorm2d training-mode stats (biased var, eps=1e-5) -----
    tot = jnp.sum(stats, axis=(0, 1))                     # (C_out_p, 2), tiny
    m_count = jnp.float32(N * S)
    mean = tot[:, 0] / m_count
    var = jnp.maximum(tot[:, 1] / m_count - mean * mean, 0.0)
    inv_std = jax.lax.rsqrt(var + 1e-5)
    scale = (gamma_p.astype(jnp.float32) * inv_std).reshape(C_out_p, 1)
    shift = beta_p.astype(jnp.float32).reshape(C_out_p, 1) - mean.reshape(C_out_p, 1) * scale

    # ---- pass 2: normalize + affine + ReLU ---------------------------------
    out = pl.pallas_call(
        _bn_relu_kernel,
        grid=grid,
        in_specs=[
            pl.BlockSpec((1, C_out_p, TS), lambda n, s: (n, 0, s)),
            pl.BlockSpec((C_out_p, 1), lambda n, s: (0, 0)),
            pl.BlockSpec((C_out_p, 1), lambda n, s: (0, 0)),
        ],
        out_specs=pl.BlockSpec((1, C_out_p, TS), lambda n, s: (n, 0, s)),
        out_shape=jax.ShapeDtypeStruct((N, C_out_p, S), jnp.float32),
        compiler_params=pltpu.CompilerParams(
            dimension_semantics=("parallel", "parallel")),
    )(y, scale, shift)

    if C_out_p != C_out:
        out = out[:, :C_out, :]
    return out.reshape(N, C_out, OH, OW)     # already NCHW; no transpose


# --------------------------------------------------------------- reference ---
def _reference(x, weight, bias, gamma, beta, stride, padding):
    y = jax.lax.conv_general_dilated(
        x, weight, (stride, stride), [(padding, padding)] * 2,
        dimension_numbers=("NCHW", "OIHW", "NCHW"))
    y = y + bias[None, :, None, None]
    mean = y.mean(axis=(0, 2, 3), keepdims=True)
    var = ((y - mean) ** 2).mean(axis=(0, 2, 3), keepdims=True)
    yh = (y - mean) * jax.lax.rsqrt(var + 1e-5)
    return jnp.maximum(yh * gamma[None, :, None, None] + beta[None, :, None, None], 0.0)


# --------------------------------------------------------------------- main --
if __name__ == "__main__":
    # Small shapes consistent with the module: ConvBlock(4, 8)
    N, C_in, H, W = 2, 4, 16, 16
    C_out, KH, KW = 8, 4, 4

    key = jax.random.PRNGKey(0)
    kx, kw_, kb = jax.random.split(key, 3)

    x = jax.random.normal(kx, (N, C_in, H, W), dtype=jnp.float32)

    fan_in = C_in * KH * KW
    bound = 1.0 / (fan_in ** 0.5)
    weight = jax.random.uniform(kw_, (C_out, C_in, KH, KW), jnp.float32,
                                minval=-bound, maxval=bound)
    bias = jax.random.uniform(kb, (C_out,), jnp.float32, minval=-bound, maxval=bound)
    gamma = jnp.ones((C_out,), jnp.float32)   # BatchNorm2d default init
    beta = jnp.zeros((C_out,), jnp.float32)

    out = conv_block(x, weight, bias, gamma, beta,
                     kernel_size=4, stride=2, padding=1)
    jax.block_until_ready(out)

    assert out.shape == (N, C_out, H // 2, W // 2), out.shape
    ref = _reference(x, weight, bias, gamma, beta, 2, 1)
    max_err = float(jnp.max(jnp.abs(out - ref)))
    assert max_err < 7.5e-2, f"max abs error vs reference: {max_err}"
    print("KERNEL_OK")
</pallas_src>

<mosaic_0001>
module attributes {stable_mosaic.version = 11 : i64} {
  func.func @_bn_relu_kernel(%arg0: i32, %arg1: i32, %arg2: memref<1x8x64xf32, #tpu.memory_space<vmem>>, %arg3: memref<8x1xf32, #tpu.memory_space<vmem>>, %arg4: memref<8x1xf32, #tpu.memory_space<vmem>>, %arg5: memref<1x8x64xf32, #tpu.memory_space<vmem>>) attributes {dimension_semantics = [#tpu.dimension_semantics<parallel>, #tpu.dimension_semantics<parallel>], iteration_bounds = array<i64: 2, 1>, scalar_prefetch = 0 : i64, scratch_operands = 0 : i64, tpu.core_type = #tpu.core_type<tc>, window_params = [{transform_indices = @transform_0, window_bounds = array<i64: 1, 8, 64>}, {pipeline_mode = #tpu.pipeline_mode<synchronous>, transform_indices = @transform_1, window_bounds = array<i64: 8, 1>}, {pipeline_mode = #tpu.pipeline_mode<synchronous>, transform_indices = @transform_2, window_bounds = array<i64: 8, 1>}, {transform_indices = @transform_3, window_bounds = array<i64: 1, 8, 64>}]} {
    %c0 = arith.constant 0 : index
    %c0_0 = arith.constant 0 : index
    %c0_1 = arith.constant 0 : index
    %0 = vector.load %arg2[%c0, %c0_0, %c0_1] : memref<1x8x64xf32, #tpu.memory_space<vmem>>, vector<1x8x64xf32>
    %1 = vector.shape_cast %0 : vector<1x8x64xf32> to vector<8x64xf32>
    %c0_2 = arith.constant 0 : index
    %c0_3 = arith.constant 0 : index
    %2 = vector.load %arg3[%c0_2, %c0_3] : memref<8x1xf32, #tpu.memory_space<vmem>>, vector<8x1xf32>
    %3 = vector.broadcast %2 : vector<8x1xf32> to vector<8x64xf32>
    %4 = arith.mulf %1, %3 : vector<8x64xf32>
    %c0_4 = arith.constant 0 : index
    %c0_5 = arith.constant 0 : index
    %5 = vector.load %arg4[%c0_4, %c0_5] : memref<8x1xf32, #tpu.memory_space<vmem>>, vector<8x1xf32>
    %6 = vector.broadcast %5 : vector<8x1xf32> to vector<8x64xf32>
    %7 = arith.addf %4, %6 : vector<8x64xf32>
    %cst = arith.constant 0.000000e+00 : f32
    %8 = vector.broadcast %cst : f32 to vector<8x64xf32>
    %9 = arith.maximumf %7, %8 : vector<8x64xf32>
    %c0_6 = arith.constant 0 : index
    %c0_7 = arith.constant 0 : index
    %c0_8 = arith.constant 0 : index
    %10 = vector.load %arg5[%c0_6, %c0_7, %c0_8] : memref<1x8x64xf32, #tpu.memory_space<vmem>>, vector<1x8x64xf32>
    %11 = vector.shape_cast %10 : vector<1x8x64xf32> to vector<8x64xf32>
    %12 = vector.shape_cast %9 : vector<8x64xf32> to vector<1x8x64xf32>
    tpu.vector_store %arg5[%c0_6, %c0_7, %c0_8], %12 {strides = array<i32>} : memref<1x8x64xf32, #tpu.memory_space<vmem>>, vector<1x8x64xf32>,
    return
  }
  func.func @transform_0(%arg0: i32, %arg1: i32) -> (i32, i32, i32) {
    %c0_i32 = arith.constant 0 : i32
    %c0_i32_0 = arith.constant 0 : i32
    return %arg0, %c0_i32, %arg1 : i32, i32, i32
  }
  func.func @transform_1(%arg0: i32, %arg1: i32) -> (i32, i32) {
    %c0_i32 = arith.constant 0 : i32
    %c0_i32_0 = arith.constant 0 : i32
    %c0_i32_1 = arith.constant 0 : i32
    return %c0_i32, %c0_i32_0 : i32, i32
  }
  func.func @transform_2(%arg0: i32, %arg1: i32) -> (i32, i32) {
    %c0_i32 = arith.constant 0 : i32
    %c0_i32_0 = arith.constant 0 : i32
    %c0_i32_1 = arith.constant 0 : i32
    return %c0_i32, %c0_i32_0 : i32, i32
  }
  func.func @transform_3(%arg0: i32, %arg1: i32) -> (i32, i32, i32) {
    %c0_i32 = arith.constant 0 : i32
    %c0_i32_0 = arith.constant 0 : i32
    return %arg0, %c0_i32, %arg1 : i32, i32, i32
  }
}

module attributes {stable_mosaic.version = 11 : i64} {
  func.func @_conv_gemm_stats_kernel(%arg0: i32, %arg1: i32, %arg2: memref<1x64x64xbf16, #tpu.memory_space<vmem>>, %arg3: memref<8x64xbf16, #tpu.memory_space<vmem>>, %arg4: memref<8x1xf32, #tpu.memory_space<vmem>>, %arg5: memref<1x8x64xf32, #tpu.memory_space<vmem>>, %arg6: memref<1x1x8x2xf32, #tpu.memory_space<vmem>>) attributes {dimension_semantics = [#tpu.dimension_semantics<parallel>, #tpu.dimension_semantics<parallel>], iteration_bounds = array<i64: 2, 1>, scalar_prefetch = 0 : i64, scratch_operands = 0 : i64, tpu.core_type = #tpu.core_type<tc>, window_params = [{transform_indices = @transform_0, window_bounds = array<i64: 1, 64, 64>}, {pipeline_mode = #tpu.pipeline_mode<synchronous>, transform_indices = @transform_1, window_bounds = array<i64: 8, 64>}, {pipeline_mode = #tpu.pipeline_mode<synchronous>, transform_indices = @transform_2, window_bounds = array<i64: 8, 1>}, {transform_indices = @transform_3, window_bounds = array<i64: 1, 8, 64>}, {transform_indices = @transform_4, window_bounds = array<i64: 1, 1, 8, 2>}]} {
    %c0 = arith.constant 0 : index
    %c0_0 = arith.constant 0 : index
    %0 = vector.load %arg3[%c0, %c0_0] : memref<8x64xbf16, #tpu.memory_space<vmem>>, vector<8x64xbf16>
    %c0_1 = arith.constant 0 : index
    %c0_2 = arith.constant 0 : index
    %c0_3 = arith.constant 0 : index
    %1 = vector.load %arg2[%c0_1, %c0_2, %c0_3] : memref<1x64x64xbf16, #tpu.memory_space<vmem>>, vector<1x64x64xbf16>
    %2 = vector.shape_cast %1 : vector<1x64x64xbf16> to vector<64x64xbf16>
    %cst = arith.constant dense<0.000000e+00> : vector<8x64xf32>
    %3 = tpu.matmul %0, %2, %cst {dimension_numbers = #tpu.dot_dimension_numbers<[1], [0], [0], [1], [0, 0, 1, 1], [], []>} : vector<8x64xbf16>, vector<64x64xbf16>, vector<8x64xf32> -> vector<8x64xf32>
    %c0_4 = arith.constant 0 : index
    %c0_5 = arith.constant 0 : index
    %4 = vector.load %arg4[%c0_4, %c0_5] : memref<8x1xf32, #tpu.memory_space<vmem>>, vector<8x1xf32>
    %5 = vector.broadcast %4 : vector<8x1xf32> to vector<8x64xf32>
    %6 = arith.addf %3, %5 : vector<8x64xf32>
    %c0_6 = arith.constant 0 : index
    %c0_7 = arith.constant 0 : index
    %c0_8 = arith.constant 0 : index
    %7 = vector.load %arg5[%c0_6, %c0_7, %c0_8] : memref<1x8x64xf32, #tpu.memory_space<vmem>>, vector<1x8x64xf32>
    %8 = vector.shape_cast %7 : vector<1x8x64xf32> to vector<8x64xf32>
    %9 = vector.shape_cast %6 : vector<8x64xf32> to vector<1x8x64xf32>
    tpu.vector_store %arg5[%c0_6, %c0_7, %c0_8], %9 {strides = array<i32>} : memref<1x8x64xf32, #tpu.memory_space<vmem>>, vector<1x8x64xf32>,
    %cst_9 = arith.constant dense<0.000000e+00> : vector<8xf32>
    %10 = vector.multi_reduction <add>, %6, %cst_9 [1] : vector<8x64xf32> to vector<8xf32>
    %11 = vector.shape_cast %10 : vector<8xf32> to vector<8x1xf32>
    %12 = arith.mulf %6, %6 : vector<8x64xf32>
    %cst_10 = arith.constant dense<0.000000e+00> : vector<8xf32>
    %13 = vector.multi_reduction <add>, %12, %cst_10 [1] : vector<8x64xf32> to vector<8xf32>
    %14 = vector.shape_cast %13 : vector<8xf32> to vector<8x1xf32>
    %15 = tpu.concatenate %11, %14 in 1 : vector<8x1xf32>, vector<8x1xf32> -> vector<8x2xf32>
    %c0_11 = arith.constant 0 : index
    %c0_12 = arith.constant 0 : index
    %c0_13 = arith.constant 0 : index
    %c0_14 = arith.constant 0 : index
    %16 = vector.load %arg6[%c0_11, %c0_12, %c0_13, %c0_14] : memref<1x1x8x2xf32, #tpu.memory_space<vmem>>, vector<1x1x8x2xf32>
    %17 = vector.shape_cast %16 : vector<1x1x8x2xf32> to vector<8x2xf32>
    %18 = vector.shape_cast %15 : vector<8x2xf32> to vector<1x1x8x2xf32>
    tpu.vector_store %arg6[%c0_11, %c0_12, %c0_13, %c0_14], %18 {strides = array<i32>} : memref<1x1x8x2xf32, #tpu.memory_space<vmem>>, vector<1x1x8x2xf32>,
    return
  }
  func.func @transform_0(%arg0: i32, %arg1: i32) -> (i32, i32, i32) {
    %c0_i32 = arith.constant 0 : i32
    %c0_i32_0 = arith.constant 0 : i32
    return %arg0, %c0_i32, %arg1 : i32, i32, i32
  }
  func.func @transform_1(%arg0: i32, %arg1: i32) -> (i32, i32) {
    %c0_i32 = arith.constant 0 : i32
    %c0_i32_0 = arith.constant 0 : i32
    %c0_i32_1 = arith.constant 0 : i32
    return %c0_i32, %c0_i32_0 : i32, i32
  }
  func.func @transform_2(%arg0: i32, %arg1: i32) -> (i32, i32) {
    %c0_i32 = arith.constant 0 : i32
    %c0_i32_0 = arith.constant 0 : i32
    %c0_i32_1 = arith.constant 0 : i32
    return %c0_i32, %c0_i32_0 : i32, i32
  }
  func.func @transform_3(%arg0: i32, %arg1: i32) -> (i32, i32, i32) {
    %c0_i32 = arith.constant 0 : i32
    %c0_i32_0 = arith.constant 0 : i32
    return %arg0, %c0_i32, %arg1 : i32, i32, i32
  }
  func.func @transform_4(%arg0: i32, %arg1: i32) -> (i32, i32, i32, i32) {
    %c0_i32 = arith.constant 0 : i32
    %c0_i32_0 = arith.constant 0 : i32
    %c0_i32_1 = arith.constant 0 : i32
    return %arg0, %arg1, %c0_i32, %c0_i32_0 : i32, i32, i32, i32
  }
}

</mosaic_0001>

<llo_original>
// kernel: conv_block.3
$region0: #{conv_block.3}
  #allocation0 [shape = 'u32[]', space=smem, size = 0x4, offset = 0x4, fixed_abs, tag = 'smem constant byte address 0x4 - core index']
  #allocation1 [shape = 'u32[144,128]{1,0:T(1,128)}', space=vmem, size = 0x12000, scoped, tag = 'internal scratch']
  %s0 = inlined_call_operand.vmem [shape: f32[2,8,64], index: 0, kind: input, shape index: {}]
  %s1 = inlined_call_operand.vmem [shape: f32[8,1], index: 1, kind: input, shape index: {}]
  %s2 = inlined_call_operand.vmem [shape: f32[8,1], index: 2, kind: input, shape index: {}]
  %s3 = inlined_call_operand.vmem [shape: f32[2,8,64], index: 3, kind: output, shape index: {}]
  %s4 = sld [smem:[#allocation0]]
  $region45: #{conv_block.3} parent=0
    _
  %s6 = ssub.s32 1, %s4
  %s7 = scalar_select 0, %s6, %s4
  loop: start=0, step=1, limit=4
  $region2: #{conv_block.3} parent=0 // loop_pre_header
    _
  $region3: #{conv_block.3} parent=0 // loop_header
    %s9 = sphi 0, %s13
    %p10 = scmp.ge.s32.totalorder %s9, 4
    %s16 = sphi 0, %s28
    %s17 = sphi 0, %s24
    %s18 = sphi 0, %s16
    %s19 = sphi 0, %s17
    %s20 = sphi 0, %s18
    %s21 = sphi 0, %s19
    %s33 = sphi 0, %s35
    %s36 = sphi 0, %s33
    %s37 = sphi 0, %s36
    %s53 = sphi 0, %s37
    %s57 = sphi 0, %s57
    %s59 = sphi 0, %s57
    %s60 = sphi 0, %s59
    %s74 = sphi 0, %s60
    %s78 = sphi 0, %s78
    %s80 = sphi 0, %s78
    %s81 = sphi 0, %s80
    %s95 = sphi 0, %s81
    %s103 = sphi 0, %s105
    %s106 = sphi 0, %s103
    %s107 = sphi 0, %s106
    %s123 = sphi 0, %s107
  $region4: #{conv_block.3} parent=0 // loop_header_branch
    %12 = sbr.rel (%p10) target = $region8
  $region5: #{conv_block.3} parent=0 // loop_body
    %s14 = ssub.s32 %s9, 1
    %s15 = ssub.s32 %s9, 2
    %s22 = sadd.s32 1, %s17
    %p23 = scmp.ge.s32.totalorder %s22, 1
    %s24 = scalar_select %p23, 0, %s22
    %s25 = sadd.s32 1, %s16
    %s26 = scalar_select %p23, %s25, %s16
    %p27 = scmp.ge.s32.totalorder %s26, 2
    %s28 = scalar_select %p27, 0, %s26
    %s29 = ssub.s32 %s16, %s28
    %s30 = ssub.s32 %s17, %s24
    %s31 = sor.u32 %s29, %s30
    %p32 = scmp.eq.s32.totalorder %s31, 0
    %s34 = sadd.s32 %s33, 1
    %s35 = scalar_select %p32, %s33, %s34
    %p38 = pneg %p32
    %p39 = scmp.eq.s32.totalorder %s9, 1
    %p40 = por %p38, %p39
    %p41 = scmp.ne.s32.totalorder %s33, %s36
    %p42 = scmp.eq.s32.totalorder %s9, 0
    %p43 = por %p41, %p42
    %p44 = scmp.ne.s32.totalorder %s33, %s36
    %p45 = scmp.eq.s32.totalorder %s14, 1
    %p46 = por %p44, %p45
    %p47 = scmp.ne.s32.totalorder %s36, %s37
    %p48 = scmp.eq.s32.totalorder %s14, 0
    %p49 = por %p47, %p48
    %p50 = scmp.ne.s32.totalorder %s36, %s37
    %p51 = scmp.eq.s32.totalorder %s15, 1
    %p52 = por %p50, %p51
    %p54 = scmp.ne.s32.totalorder %s37, %s53
    %p55 = scmp.eq.s32.totalorder %s15, 0
    %p56 = por %p54, %p55
    %s58 = sadd.s32 %s57, 1
    %p61 = scmp.eq.s32.totalorder %s9, 1
    %p62 = scmp.ne.s32.totalorder %s57, %s59
    %p63 = scmp.eq.s32.totalorder %s9, 0
    %p64 = por %p62, %p63
    %p65 = scmp.ne.s32.totalorder %s57, %s59
    %p66 = scmp.eq.s32.totalorder %s14, 1
    %p67 = por %p65, %p66
    %p68 = scmp.ne.s32.totalorder %s59, %s60
    %p69 = scmp.eq.s32.totalorder %s14, 0
    %p70 = por %p68, %p69
    %p71 = scmp.ne.s32.totalorder %s59, %s60
    %p72 = scmp.eq.s32.totalorder %s15, 1
    %p73 = por %p71, %p72
    %p75 = scmp.ne.s32.totalorder %s60, %s74
    %p76 = scmp.eq.s32.totalorder %s15, 0
    %p77 = por %p75, %p76
    %s79 = sadd.s32 %s78, 1
    %p82 = scmp.eq.s32.totalorder %s9, 1
    %p83 = scmp.ne.s32.totalorder %s78, %s80
    %p84 = scmp.eq.s32.totalorder %s9, 0
    %p85 = por %p83, %p84
    %p86 = scmp.ne.s32.totalorder %s78, %s80
    %p87 = scmp.eq.s32.totalorder %s14, 1
    %p88 = por %p86, %p87
    %p89 = scmp.ne.s32.totalorder %s80, %s81
    %p90 = scmp.eq.s32.totalorder %s14, 0
    %p91 = por %p89, %p90
    %p92 = scmp.ne.s32.totalorder %s80, %s81
    %p93 = scmp.eq.s32.totalorder %s15, 1
    %p94 = por %p92, %p93
    %p96 = scmp.ne.s32.totalorder %s81, %s95
    %p97 = scmp.eq.s32.totalorder %s15, 0
    %p98 = por %p96, %p97
    %s99 = ssub.s32 %s16, %s28
    %s100 = ssub.s32 %s17, %s24
    %s101 = sor.u32 %s99, %s100
    %p102 = scmp.eq.s32.totalorder %s101, 0
    %s104 = sadd.s32 %s103, 1
    %s105 = scalar_select %p102, %s103, %s104
    %p108 = pneg %p102
    %p109 = scmp.eq.s32.totalorder %s9, 1
    %p110 = por %p108, %p109
    %p111 = scmp.ne.s32.totalorder %s103, %s106
    %p112 = scmp.eq.s32.totalorder %s9, 0
    %p113 = por %p111, %p112
    %p114 = scmp.ne.s32.totalorder %s103, %s106
    %p115 = scmp.eq.s32.totalorder %s14, 1
    %p116 = por %p114, %p115
    %p117 = scmp.ne.s32.totalorder %s106, %s107
    %p118 = scmp.eq.s32.totalorder %s14, 0
    %p119 = por %p117, %p118
    %p120 = scmp.ne.s32.totalorder %s106, %s107
    %p121 = scmp.eq.s32.totalorder %s15, 1
    %p122 = por %p120, %p121
    %p124 = scmp.ne.s32.totalorder %s107, %s123
    %p125 = scmp.eq.s32.totalorder %s15, 0
    %p126 = por %p124, %p125
    %p127 = scmp.le.s32.totalorder 1, %s9
    %p128 = scmp.lt.s32.totalorder %s9, 3
    %p129 = pnand %p127, %p128
    %p130 = pneg %p129
    // Predicated region
    $region9: #{conv_block.3} parent=5 // pred_check
      _
    $region10: #{conv_block.3} parent=5 // pred_check_branch
      %132 = sbr.rel (%p129) target = $region12
    $region11: #{conv_block.3} parent=5 // pred_region
      %s133 = ssub.s32 %s9, 1
      // Predicated region
      $region13: #{conv_block.3} parent=11 // pred_check
        %p134 = pneg %p70
      $region14: #{conv_block.3} parent=11 // pred_check_branch
        %136 = sbr.rel (%p134) target = $region16
      $region15: #{conv_block.3} parent=11 // pred_region
        _
      $region16: #{conv_block.3} parent=11 // pred_fallthru
        _
      // Predicated region
      $region17: #{conv_block.3} parent=11 // pred_check
        %p137 = pneg %p91
      $region18: #{conv_block.3} parent=11 // pred_check_branch
        %139 = sbr.rel (%p137) target = $region20
      $region19: #{conv_block.3} parent=11 // pred_region
        _
      $region20: #{conv_block.3} parent=11 // pred_fallthru
        _
    $region12: #{conv_block.3} parent=5 // pred_fallthru
      _
    %p140 = scmp.lt.s32.totalorder %s9, 2
    // Predicated region
    $region21: #{conv_block.3} parent=5 // pred_check
      %p141 = pneg %p140
    $region22: #{conv_block.3} parent=5 // pred_check_branch
      %143 = sbr.rel (%p141) target = $region24
    $region23: #{conv_block.3} parent=5 // pred_region
      // Predicated region
      $region25: #{conv_block.3} parent=23 // pred_check
        %p144 = pneg %p43
      $region26: #{conv_block.3} parent=23 // pred_check_branch
        %146 = sbr.rel (%p144) target = $region28
      $region27: #{conv_block.3} parent=23 // pred_region
        %p147 = scmp.lt.s32.totalorder %s16, 1
        %s148 = scalar_select %p147, %s16, 1
        %p149 = scmp.lt.s32.totalorder %s17, 0
        %s150 = scalar_select %p149, %s17, 0
        %s151 = sadd.s32 %s150, %s148
        %s152 = smul.addr %s151, 8
        %s153 = scalar_lea.vmem %s0, %s152
      $region28: #{conv_block.3} parent=23 // pred_fallthru
        _
    $region24: #{conv_block.3} parent=5 // pred_fallthru
      _
    %p154 = scmp.le.s32.totalorder 1, %s9
    %p155 = scmp.lt.s32.totalorder %s9, 3
    %p156 = pnand %p154, %p155
    %p157 = pneg %p156
    // Predicated region
    $region29: #{conv_block.3} parent=5 // pred_check
      _
    $region30: #{conv_block.3} parent=5 // pred_check_branch
      %159 = sbr.rel (%p156) target = $region32
    $region31: #{conv_block.3} parent=5 // pred_region
      %s160 = ssub.s32 %s9, 1
      %p161 = scmp.lt.s32.totalorder %s18, 1
      %s162 = scalar_select %p161, %s18, 1
      %p163 = scmp.lt.s32.totalorder %s19, 0
      %s164 = scalar_select %p163, %s19, 0
      %s165 = sadd.s32 %s164, %s162
      %s166 = smul.addr %s165, 8
      %s167 = scalar_lea.vmem %s0, %s166
      %p168 = pneg %p49
      %p169 = pneg %p46
      %p170 = pneg %p70
      %p171 = pneg %p67
      %p172 = pneg %p91
      %p173 = pneg %p88
      %p174 = pneg %p119
      %p175 = pneg %p116
      %p176 = scmp.lt.s32.totalorder %s18, 1
      %s177 = scalar_select %p176, %s18, 1
      %p178 = scmp.lt.s32.totalorder %s19, 0
      %s179 = scalar_select %p178, %s19, 0
      %s180 = sadd.s32 %s179, %s177
      %s181 = smul.addr %s180, 8
      %s182 = scalar_lea.vmem %s3, %s181
      %p183 = scmp.lt.s32.totalorder %s18, 1
      %s184 = scalar_select %p183, %s18, 1
      %p185 = scmp.lt.s32.totalorder %s19, 0
      %s186 = scalar_select %p185, %s19, 0
      %s187 = sadd.s32 %s186, %s184
      %s188 = smul.addr %s187, 8
      %s189 = scalar_lea.vmem %s0, %s188
      %p190 = scmp.lt.s32.totalorder %s18, 1
      %s191 = scalar_select %p190, %s18, 1
      %p192 = scmp.lt.s32.totalorder %s19, 0
      %s193 = scalar_select %p192, %s19, 0
      %s194 = sadd.s32 %s193, %s191
      %s195 = smul.addr %s194, 8
      %s196 = scalar_lea.vmem %s3, %s195
      %v197 = vld [vmem:[%s189] sm:$0xff]
      %v198 = vld [vmem:[%s1] sm:$0xff]
      %200 = vset.pattern.permute.xlu0 0
      %201 = vperm.xlu0 %200, %v198
      %v202 = vpop.permute.xlu0 %201
      %v204 = vmul.f32 %v197, %v202
      %v205 = vld [vmem:[%s2] sm:$0xff]
      %207 = vset.pattern.permute.xlu0 0
      %208 = vperm.xlu0 %207, %v205
      %v209 = vpop.permute.xlu0 %208
      %v211 = vadd.f32 %v204, %v209
      %v212 = vmax.f32 %v211, 0.0
      %vm213 = vcmask 523264
      %214 = vst.msk [vmem:[%s196] sm:$0xff] %vm213, %v212
      %p215 = scmp.lt.s32.totalorder %s18, 1
      %s216 = scalar_select %p215, %s18, 1
      %p217 = scmp.lt.s32.totalorder %s19, 0
      %s218 = scalar_select %p217, %s19, 0
      %s219 = sadd.s32 %s218, %s216
      %s220 = smul.addr %s219, 8
      %s221 = scalar_lea.vmem %s3, %s220
      // Predicated region
      $region33: #{conv_block.3} parent=31 // pred_check
        %p222 = pneg %p116
      $region34: #{conv_block.3} parent=31 // pred_check_branch
        %224 = sbr.rel (%p222) target = $region36
      $region35: #{conv_block.3} parent=31 // pred_region
        _
      $region36: #{conv_block.3} parent=31 // pred_fallthru
        _
    $region32: #{conv_block.3} parent=5 // pred_fallthru
      _
    %p225 = scmp.le.s32.totalorder 2, %s9
    // Predicated region
    $region37: #{conv_block.3} parent=5 // pred_check
      %p226 = pneg %p225
    $region38: #{conv_block.3} parent=5 // pred_check_branch
      %228 = sbr.rel (%p226) target = $region40
    $region39: #{conv_block.3} parent=5 // pred_region
      %s229 = ssub.s32 %s9, 2
      // Predicated region
      $region41: #{conv_block.3} parent=39 // pred_check
        %p230 = pneg %p122
      $region42: #{conv_block.3} parent=39 // pred_check_branch
        %232 = sbr.rel (%p230) target = $region44
      $region43: #{conv_block.3} parent=39 // pred_region
        %p233 = scmp.lt.s32.totalorder %s20, 1
        %s234 = scalar_select %p233, %s20, 1
        %p235 = scmp.lt.s32.totalorder %s21, 0
        %s236 = scalar_select %p235, %s21, 0
        %s237 = sadd.s32 %s236, %s234
        %s238 = smul.addr %s237, 8
        %s239 = scalar_lea.vmem %s3, %s238
      $region44: #{conv_block.3} parent=39 // pred_fallthru
        _
    $region40: #{conv_block.3} parent=5 // pred_fallthru
      _
  $region6: #{conv_block.3} parent=0 // loop_footer
    %s13 = sadd.s32 1, %s9
  $region7: #{conv_block.3} parent=0 // loop_footer_branch
    %8 = sbr.rel target = $region3
  $region8: #{conv_block.3} parent=0 // loop_exit
    _

// kernel: conv_block.2
$region0: #{conv_block.2}
  #allocation0 [shape = 'u32[]', space=smem, size = 0x4, offset = 0x4, fixed_abs, tag = 'smem constant byte address 0x4 - core index']
  #allocation1 [shape = 'u32[144,128]{1,0:T(1,128)}', space=vmem, size = 0x12000, scoped, tag = 'internal scratch']
  %s0 = inlined_call_operand.vmem [shape: bf16[2,64,64], index: 0, kind: input, shape index: {}]
  %s1 = inlined_call_operand.vmem [shape: bf16[8,64], index: 1, kind: input, shape index: {}]
  %s2 = inlined_call_operand.vmem [shape: f32[8,1], index: 2, kind: input, shape index: {}]
  %s3 = inlined_call_operand.vmem [shape: f32[2,8,64], index: 3, kind: output, shape index: {0}]
  %s4 = inlined_call_operand.vmem [shape: f32[2,1,8,2], index: 4, kind: output, shape index: {1}]
  %5 = xla_tuple %s3, %s4
  %s6 = sld [smem:[#allocation0]]
  $region53: #{conv_block.2} parent=0
    _
  %s8 = ssub.s32 1, %s6
  %s9 = scalar_select 0, %s8, %s6
  loop: start=0, step=1, limit=4
  $region2: #{conv_block.2} parent=0 // loop_pre_header
    _
  $region3: #{conv_block.2} parent=0 // loop_header
    %s11 = sphi 0, %s15
    %p12 = scmp.ge.s32.totalorder %s11, 4
    %s18 = sphi 0, %s30
    %s19 = sphi 0, %s26
    %s20 = sphi 0, %s18
    %s21 = sphi 0, %s19
    %s22 = sphi 0, %s20
    %s23 = sphi 0, %s21
    %s35 = sphi 0, %s37
    %s38 = sphi 0, %s35
    %s39 = sphi 0, %s38
    %s55 = sphi 0, %s39
    %s59 = sphi 0, %s59
    %s61 = sphi 0, %s59
    %s62 = sphi 0, %s61
    %s76 = sphi 0, %s62
    %s80 = sphi 0, %s80
    %s82 = sphi 0, %s80
    %s83 = sphi 0, %s82
    %s97 = sphi 0, %s83
    %s105 = sphi 0, %s107
    %s108 = sphi 0, %s105
    %s109 = sphi 0, %s108
    %s125 = sphi 0, %s109
    %s133 = sphi 0, %s135
    %s136 = sphi 0, %s133
    %s137 = sphi 0, %s136
    %s153 = sphi 0, %s137
  $region4: #{conv_block.2} parent=0 // loop_header_branch
    %14 = sbr.rel (%p12) target = $region8
  $region5: #{conv_block.2} parent=0 // loop_body
    %s16 = ssub.s32 %s11, 1
    %s17 = ssub.s32 %s11, 2
    %s24 = sadd.s32 1, %s19
    %p25 = scmp.ge.s32.totalorder %s24, 1
    %s26 = scalar_select %p25, 0, %s24
    %s27 = sadd.s32 1, %s18
    %s28 = scalar_select %p25, %s27, %s18
    %p29 = scmp.ge.s32.totalorder %s28, 2
    %s30 = scalar_select %p29, 0, %s28
    %s31 = ssub.s32 %s18, %s30
    %s32 = ssub.s32 %s19, %s26
    %s33 = sor.u32 %s31, %s32
    %p34 = scmp.eq.s32.totalorder %s33, 0
    %s36 = sadd.s32 %s35, 1
    %s37 = scalar_select %p34, %s35, %s36
    %p40 = pneg %p34
    %p41 = scmp.eq.s32.totalorder %s11, 1
    %p42 = por %p40, %p41
    %p43 = scmp.ne.s32.totalorder %s35, %s38
    %p44 = scmp.eq.s32.totalorder %s11, 0
    %p45 = por %p43, %p44
    %p46 = scmp.ne.s32.totalorder %s35, %s38
    %p47 = scmp.eq.s32.totalorder %s16, 1
    %p48 = por %p46, %p47
    %p49 = scmp.ne.s32.totalorder %s38, %s39
    %p50 = scmp.eq.s32.totalorder %s16, 0
    %p51 = por %p49, %p50
    %p52 = scmp.ne.s32.totalorder %s38, %s39
    %p53 = scmp.eq.s32.totalorder %s17, 1
    %p54 = por %p52, %p53
    %p56 = scmp.ne.s32.totalorder %s39, %s55
    %p57 = scmp.eq.s32.totalorder %s17, 0
    %p58 = por %p56, %p57
    %s60 = sadd.s32 %s59, 1
    %p63 = scmp.eq.s32.totalorder %s11, 1
    %p64 = scmp.ne.s32.totalorder %s59, %s61
    %p65 = scmp.eq.s32.totalorder %s11, 0
    %p66 = por %p64, %p65
    %p67 = scmp.ne.s32.totalorder %s59, %s61
    %p68 = scmp.eq.s32.totalorder %s16, 1
    %p69 = por %p67, %p68
    %p70 = scmp.ne.s32.totalorder %s61, %s62
    %p71 = scmp.eq.s32.totalorder %s16, 0
    %p72 = por %p70, %p71
    %p73 = scmp.ne.s32.totalorder %s61, %s62
    %p74 = scmp.eq.s32.totalorder %s17, 1
    %p75 = por %p73, %p74
    %p77 = scmp.ne.s32.totalorder %s62, %s76
    %p78 = scmp.eq.s32.totalorder %s17, 0
    %p79 = por %p77, %p78
    %s81 = sadd.s32 %s80, 1
    %p84 = scmp.eq.s32.totalorder %s11, 1
    %p85 = scmp.ne.s32.totalorder %s80, %s82
    %p86 = scmp.eq.s32.totalorder %s11, 0
    %p87 = por %p85, %p86
    %p88 = scmp.ne.s32.totalorder %s80, %s82
    %p89 = scmp.eq.s32.totalorder %s16, 1
    %p90 = por %p88, %p89
    %p91 = scmp.ne.s32.totalorder %s82, %s83
    %p92 = scmp.eq.s32.totalorder %s16, 0
    %p93 = por %p91, %p92
    %p94 = scmp.ne.s32.totalorder %s82, %s83
    %p95 = scmp.eq.s32.totalorder %s17, 1
    %p96 = por %p94, %p95
    %p98 = scmp.ne.s32.totalorder %s83, %s97
    %p99 = scmp.eq.s32.totalorder %s17, 0
    %p100 = por %p98, %p99
    %s101 = ssub.s32 %s18, %s30
    %s102 = ssub.s32 %s19, %s26
    %s103 = sor.u32 %s101, %s102
    %p104 = scmp.eq.s32.totalorder %s103, 0
    %s106 = sadd.s32 %s105, 1
    %s107 = scalar_select %p104, %s105, %s106
    %p110 = pneg %p104
    %p111 = scmp.eq.s32.totalorder %s11, 1
    %p112 = por %p110, %p111
    %p113 = scmp.ne.s32.totalorder %s105, %s108
    %p114 = scmp.eq.s32.totalorder %s11, 0
    %p115 = por %p113, %p114
    %p116 = scmp.ne.s32.totalorder %s105, %s108
    %p117 = scmp.eq.s32.totalorder %s16, 1
    %p118 = por %p116, %p117
    %p119 = scmp.ne.s32.totalorder %s108, %s109
    %p120 = scmp.eq.s32.totalorder %s16, 0
    %p121 = por %p119, %p120
    %p122 = scmp.ne.s32.totalorder %s108, %s109
    %p123 = scmp.eq.s32.totalorder %s17, 1
    %p124 = por %p122, %p123
    %p126 = scmp.ne.s32.totalorder %s109, %s125
    %p127 = scmp.eq.s32.totalorder %s17, 0
    %p128 = por %p126, %p127
    %s129 = ssub.s32 %s18, %s30
    %s130 = ssub.s32 %s19, %s26
    %s131 = sor.u32 %s129, %s130
    %p132 = scmp.eq.s32.totalorder %s131, 0
    %s134 = sadd.s32 %s133, 1
    %s135 = scalar_select %p132, %s133, %s134
    %p138 = pneg %p132
    %p139 = scmp.eq.s32.totalorder %s11, 1
    %p140 = por %p138, %p139
    %p141 = scmp.ne.s32.totalorder %s133, %s136
    %p142 = scmp.eq.s32.totalorder %s11, 0
    %p143 = por %p141, %p142
    %p144 = scmp.ne.s32.totalorder %s133, %s136
    %p145 = scmp.eq.s32.totalorder %s16, 1
    %p146 = por %p144, %p145
    %p147 = scmp.ne.s32.totalorder %s136, %s137
    %p148 = scmp.eq.s32.totalorder %s16, 0
    %p149 = por %p147, %p148
    %p150 = scmp.ne.s32.totalorder %s136, %s137
    %p151 = scmp.eq.s32.totalorder %s17, 1
    %p152 = por %p150, %p151
    %p154 = scmp.ne.s32.totalorder %s137, %s153
    %p155 = scmp.eq.s32.totalorder %s17, 0
    %p156 = por %p154, %p155
    %p157 = scmp.le.s32.totalorder 1, %s11
    %p158 = scmp.lt.s32.totalorder %s11, 3
    %p159 = pnand %p157, %p158
    %p160 = pneg %p159
    // Predicated region
    $region9: #{conv_block.2} parent=5 // pred_check
      _
    $region10: #{conv_block.2} parent=5 // pred_check_branch
      %162 = sbr.rel (%p159) target = $region12
    $region11: #{conv_block.2} parent=5 // pred_region
      %s163 = ssub.s32 %s11, 1
      // Predicated region
      $region13: #{conv_block.2} parent=11 // pred_check
        %p164 = pneg %p72
      $region14: #{conv_block.2} parent=11 // pred_check_branch
        %166 = sbr.rel (%p164) target = $region16
      $region15: #{conv_block.2} parent=11 // pred_region
        _
      $region16: #{conv_block.2} parent=11 // pred_fallthru
        _
      // Predicated region
      $region17: #{conv_block.2} parent=11 // pred_check
        %p167 = pneg %p93
      $region18: #{conv_block.2} parent=11 // pred_check_branch
        %169 = sbr.rel (%p167) target = $region20
      $region19: #{conv_block.2} parent=11 // pred_region
        _
      $region20: #{conv_block.2} parent=11 // pred_fallthru
        _
    $region12: #{conv_block.2} parent=5 // pred_fallthru
      _
    %p170 = scmp.lt.s32.totalorder %s11, 2
    // Predicated region
    $region21: #{conv_block.2} parent=5 // pred_check
      %p171 = pneg %p170
    $region22: #{conv_block.2} parent=5 // pred_check_branch
      %173 = sbr.rel (%p171) target = $region24
    $region23: #{conv_block.2} parent=5 // pred_region
      // Predicated region
      $region25: #{conv_block.2} parent=23 // pred_check
        %p174 = pneg %p45
      $region26: #{conv_block.2} parent=23 // pred_check_branch
        %176 = sbr.rel (%p174) target = $region28
      $region27: #{conv_block.2} parent=23 // pred_region
        %p177 = scmp.lt.s32.totalorder %s18, 1
        %s178 = scalar_select %p177, %s18, 1
        %p179 = scmp.lt.s32.totalorder %s19, 0
        %s180 = scalar_select %p179, %s19, 0
        %s181 = smul.addr %s178, 8
        %s182 = sadd.s32 %s180, %s181
        %s183 = smul.addr %s182, 4
        %s184 = scalar_lea.vmem %s0, %s183
      $region28: #{conv_block.2} parent=23 // pred_fallthru
        _
    $region24: #{conv_block.2} parent=5 // pred_fallthru
      _
    %p185 = scmp.le.s32.totalorder 1, %s11
    %p186 = scmp.lt.s32.totalorder %s11, 3
    %p187 = pnand %p185, %p186
    %p188 = pneg %p187
    // Predicated region
    $region29: #{conv_block.2} parent=5 // pred_check
      _
    $region30: #{conv_block.2} parent=5 // pred_check_branch
      %190 = sbr.rel (%p187) target = $region32
    $region31: #{conv_block.2} parent=5 // pred_region
      %s191 = ssub.s32 %s11, 1
      %p192 = scmp.lt.s32.totalorder %s20, 1
      %s193 = scalar_select %p192, %s20, 1
      %p194 = scmp.lt.s32.totalorder %s21, 0
      %s195 = scalar_select %p194, %s21, 0
      %s196 = smul.addr %s193, 8
      %s197 = sadd.s32 %s195, %s196
      %s198 = smul.addr %s197, 4
      %s199 = scalar_lea.vmem %s0, %s198
      %p200 = pneg %p51
      %p201 = pneg %p48
      %p202 = pneg %p72
      %p203 = pneg %p69
      %p204 = pneg %p93
      %p205 = pneg %p90
      %p206 = pneg %p121
      %p207 = pneg %p118
      %p208 = scmp.lt.s32.totalorder %s20, 1
      %s209 = scalar_select %p208, %s20, 1
      %p210 = scmp.lt.s32.totalorder %s21, 0
      %s211 = scalar_select %p210, %s21, 0
      %s212 = sadd.s32 %s211, %s209
      %s213 = smul.addr %s212, 8
      %s214 = scalar_lea.vmem %s3, %s213
      %p215 = pneg %p149
      %p216 = pneg %p146
      %p217 = scmp.lt.s32.totalorder %s20, 1
      %s218 = scalar_select %p217, %s20, 1
      %p219 = scmp.lt.s32.totalorder %s21, 0
      %s220 = scalar_select %p219, %s21, 0
      %s221 = sadd.s32 %s220, %s218
      %s222 = smul.addr %s221, 8
      %s223 = scalar_lea.vmem %s4, %s222
      %p224 = scmp.lt.s32.totalorder %s20, 1
      %s225 = scalar_select %p224, %s20, 1
      %p226 = scmp.lt.s32.totalorder %s21, 0
      %s227 = scalar_select %p226, %s21, 0
      %s228 = smul.addr %s225, 8
      %s229 = sadd.s32 %s227, %s228
      %s230 = smul.addr %s229, 4
      %s231 = scalar_lea.vmem %s0, %s230
      %p232 = scmp.lt.s32.totalorder %s20, 1
      %s233 = scalar_select %p232, %s20, 1
      %p234 = scmp.lt.s32.totalorder %s21, 0
      %s235 = scalar_select %p234, %s21, 0
      %s236 = sadd.s32 %s235, %s233
      %s237 = smul.addr %s236, 8
      %s238 = scalar_lea.vmem %s3, %s237
      %p239 = scmp.lt.s32.totalorder %s20, 1
      %s240 = scalar_select %p239, %s20, 1
      %p241 = scmp.lt.s32.totalorder %s21, 0
      %s242 = scalar_select %p241, %s21, 0
      %s243 = sadd.s32 %s242, %s240
      %s244 = smul.addr %s243, 8
      %s245 = scalar_lea.vmem %s4, %s244
      %v247 = vld [vmem:[%s1] sm:$0xf]
      %v248 = vld [vmem:[%s231] sm:$0xf]
      %v249 = vld [vmem:[%s231 + $0x4] sm:$0xf]
      %v250 = vld [vmem:[%s231 + $0x8] sm:$0xf]
      %v251 = vld [vmem:[%s231 + $0xc] sm:$0xf]
      %v252 = vld [vmem:[%s231 + $0x10] sm:$0xf]
      %v253 = vld [vmem:[%s231 + $0x14] sm:$0xf]
      %v254 = vld [vmem:[%s231 + $0x18] sm:$0xf]
      %v255 = vld [vmem:[%s231 + $0x1c] sm:$0xf]
      %v256 = vld [vmem:[%s2] sm:$0xff]
      %258 = vset.pattern.permute.xlu0 0
      %259 = vperm.xlu0 %258, %v256
      %v260 = vpop.permute.xlu0 %259
      %v270 = vunpack.c.l.b16 %v248
      %v271 = vunpack.c.l.b16 %v249
      %v272 = vunpack.c.l.b16 %v250
      %v273 = vunpack.c.l.b16 %v251
      %v274 = vunpack.c.l.b16 %v252
      %v275 = vunpack.c.l.b16 %v253
      %v276 = vunpack.c.l.b16 %v254
      %v277 = vunpack.c.l.b16 %v255
      %v278 = vpack.c.b16 %v271, %v270
      %v279 = vpack.c.b16 %v273, %v272
      %v280 = vpack.c.b16 %v275, %v274
      %v281 = vpack.c.b16 %v277, %v276
      %vm286 = vcmask 523264
      %v288 = vsel %vm286, %v247, 0
      %290 = vmatprep.subr.bf16.mxu0 0
      %291 = vmatpush1.bf16.msra.mxu0 %v278
      %292 = vmatprep.subr.bf16.mxu0 0
      %293 = vmatpush1.bf16.msra.mxu0 %v279
      %294 = vmatprep.subr.bf16.mxu0 0
      %295 = vmatpush1.bf16.msra.mxu0 %v280
      %296 = vmatprep.subr.bf16.mxu0 0
      %297 = vmatpush1.bf16.msra.mxu0 %v281
      %298 = vmatprep.subr.bf16.mxu0 0
      %299 = vmatpush1.bf16.msra.mxu0 0
      %300 = vmatprep.subr.bf16.mxu0 0
      %301 = vmatpush1.bf16.msra.mxu0 0
      %302 = vmatprep.subr.bf16.mxu0 0
      %303 = vmatpush1.bf16.msra.mxu0 0
      %304 = vmatprep.subr.bf16.mxu0 0
      %305 = vmatpush1.bf16.msra.mxu0 0
      %306 = vmatprep.subr.bf16.mxu0 0
      %307 = vmatpush1.bf16.msra.mxu0 0
      %308 = vmatprep.subr.bf16.mxu0 0
      %309 = vmatpush1.bf16.msra.mxu0 0
      %310 = vmatprep.subr.bf16.mxu0 0
      %311 = vmatpush1.bf16.msra.mxu0 0
      %312 = vmatprep.subr.bf16.mxu0 0
      %313 = vmatpush1.bf16.msra.mxu0 0
      %314 = vmatprep.subr.bf16.mxu0 0
      %315 = vmatpush1.bf16.msra.mxu0 0
      %316 = vmatprep.subr.bf16.mxu0 0
      %317 = vmatpush1.bf16.msra.mxu0 0
      %318 = vmatprep.subr.bf16.mxu0 0
      %319 = vmatpush1.bf16.msra.mxu0 0
      %320 = vmatprep.subr.bf16.mxu0 0
      %321 = vmatpush1.bf16.msra.mxu0 0
      %322 = vmatprep.mubr.bf16.mxu0 0
      %323 = vmatmul.mubr.bf16.gmra.mrb[0].mxu0 %v288
      %v324 = vpop.f32.mrb[0].mxu0
      %v325 = vadd.f32 %v260, %v324
      %v326 = vpop.f32.mrb[0].mxu0
      %v327 = vpop.f32.mrb[0].mxu0
      %v328 = vpop.f32.mrb[0].mxu0
      %329 = vdwg.mxu0
      %330 = vst.msk [vmem:[%s238] sm:$0xff] %vm286, %v325
      %v331 = vsel %vm286, %v325, 0.0
      %332 = vadd.xlane.f32.xlu0 %v331
      %v333 = vpop.xlane.xlu0 %332
      %v334 = vmul.f32 %v325, %v325
      %v335 = vsel %vm286, %v334, 0.0
      %336 = vadd.xlane.f32.xlu0 %v335
      %v337 = vpop.xlane.xlu0 %336
      %vm338 = vcmask 7168
      %v339 = vsel %vm338, %v333, %v337
      %vm340 = vcmask 15360
      %341 = vst.msk [vmem:[%s245] sm:$0xff] %vm340, %v339
      %p342 = scmp.lt.s32.totalorder %s20, 1
      %s343 = scalar_select %p342, %s20, 1
      %p344 = scmp.lt.s32.totalorder %s21, 0
      %s345 = scalar_select %p344, %s21, 0
      %s346 = sadd.s32 %s345, %s343
      %s347 = smul.addr %s346, 8
      %s348 = scalar_lea.vmem %s3, %s347
      %p349 = scmp.lt.s32.totalorder %s20, 1
      %s350 = scalar_select %p349, %s20, 1
      %p351 = scmp.lt.s32.totalorder %s21, 0
      %s352 = scalar_select %p351, %s21, 0
      %s353 = sadd.s32 %s352, %s350
      %s354 = smul.addr %s353, 8
      %s355 = scalar_lea.vmem %s4, %s354
      // Predicated region
      $region33: #{conv_block.2} parent=31 // pred_check
        %p356 = pneg %p118
      $region34: #{conv_block.2} parent=31 // pred_check_branch
        %358 = sbr.rel (%p356) target = $region36
      $region35: #{conv_block.2} parent=31 // pred_region
        _
      $region36: #{conv_block.2} parent=31 // pred_fallthru
        _
      // Predicated region
      $region37: #{conv_block.2} parent=31 // pred_check
        %p359 = pneg %p146
      $region38: #{conv_block.2} parent=31 // pred_check_branch
        %361 = sbr.rel (%p359) target = $region40
      $region39: #{conv_block.2} parent=31 // pred_region
        _
      $region40: #{conv_block.2} parent=31 // pred_fallthru
        _
    $region32: #{conv_block.2} parent=5 // pred_fallthru
      _
    %p362 = scmp.le.s32.totalorder 2, %s11
    // Predicated region
    $region41: #{conv_block.2} parent=5 // pred_check
      %p363 = pneg %p362
    $region42: #{conv_block.2} parent=5 // pred_check_branch
      %365 = sbr.rel (%p363) target = $region44
    $region43: #{conv_block.2} parent=5 // pred_region
      %s366 = ssub.s32 %s11, 2
      // Predicated region
      $region45: #{conv_block.2} parent=43 // pred_check
        %p367 = pneg %p124
      $region46: #{conv_block.2} parent=43 // pred_check_branch
        %369 = sbr.rel (%p367) target = $region48
      $region47: #{conv_block.2} parent=43 // pred_region
        %p370 = scmp.lt.s32.totalorder %s22, 1
        %s371 = scalar_select %p370, %s22, 1
        %p372 = scmp.lt.s32.totalorder %s23, 0
        %s373 = scalar_select %p372, %s23, 0
        %s374 = sadd.s32 %s373, %s371
        %s375 = smul.addr %s374, 8
        %s376 = scalar_lea.vmem %s3, %s375
      $region48: #{conv_block.2} parent=43 // pred_fallthru
        _
      // Predicated region
      $region49: #{conv_block.2} parent=43 // pred_check
        %p377 = pneg %p152
      $region50: #{conv_block.2} parent=43 // pred_check_branch
        %379 = sbr.rel (%p377) target = $region52
      $region51: #{conv_block.2} parent=43 // pred_region
        %p380 = scmp.lt.s32.totalorder %s22, 1
        %s381 = scalar_select %p380, %s22, 1
        %p382 = scmp.lt.s32.totalorder %s23, 0
        %s383 = scalar_select %p382, %s23, 0
        %s384 = sadd.s32 %s383, %s381
        %s385 = smul.addr %s384, 8
        %s386 = scalar_lea.vmem %s4, %s385
      $region52: #{conv_block.2} parent=43 // pred_fallthru
        _
    $region44: #{conv_block.2} parent=5 // pred_fallthru
      _
  $region6: #{conv_block.2} parent=0 // loop_footer
    %s15 = sadd.s32 1, %s11
  $region7: #{conv_block.2} parent=0 // loop_footer_branch
    %10 = sbr.rel target = $region3
  $region8: #{conv_block.2} parent=0 // loop_exit
    _

</llo_original>
